<compile_context>
chip_gen: v5e
topology: v5e:2x2
jax: 0.10.0
libtpu: 0.0.40
codegen_flags: <defaults>
</compile_context>

<pallas_src>
import functools
import math

import numpy as np
import jax
import jax.numpy as jnp
from jax import lax
from jax.experimental import pallas as pl
from jax.experimental.pallas import tpu as pltpu


# ----------------------------------------------------------------------------
# Fused multi-head attention kernel: one batch element per grid step.
# refs layout: q, k, v, wq, bq, wk, bk, wv, bv, wo, bo, [aw], [am], out
# ----------------------------------------------------------------------------
def _fused_mha_kernel(*refs, h, d_k, d_v, scale, has_weights, has_mask):
    (q_ref, k_ref, v_ref,
     wq_ref, bq_ref, wk_ref, bk_ref, wv_ref, bv_ref, wo_ref, bo_ref) = refs[:11]
    idx = 11
    aw_ref = am_ref = None
    if has_weights:
        aw_ref = refs[idx]; idx += 1
    if has_mask:
        am_ref = refs[idx]; idx += 1
    o_ref = refs[idx]

    q2d = q_ref[0]          # (nq, d_model)
    k2d = k_ref[0]          # (nk, d_model)
    v2d = v_ref[0]          # (nk, d_model)

    # Projections (MXU).  The 1/sqrt(d_k) scale is folded into the Q projection.
    qp = (jnp.dot(q2d, wq_ref[...], preferred_element_type=jnp.float32)
          + bq_ref[...]) * scale                                    # (nq, h*d_k)
    kp = jnp.dot(k2d, wk_ref[...], preferred_element_type=jnp.float32) + bk_ref[...]
    vp = jnp.dot(v2d, wv_ref[...], preferred_element_type=jnp.float32) + bv_ref[...]

    neg_big = jnp.float32(-1e30)   # finite: no NaN on fully-masked rows

    # Output projection fused per head: concat_h(o_h) @ Wo == sum_h o_h @ Wo[h].
    out = bo_ref[...]              # (1, d_model); broadcasts on first add
    for i in range(h):             # h is small & static -> trace-time unroll
        q_h = qp[:, i * d_k:(i + 1) * d_k]     # (nq, d_k), already scaled
        k_h = kp[:, i * d_k:(i + 1) * d_k]     # (nk, d_k)
        v_h = vp[:, i * d_v:(i + 1) * d_v]     # (nk, d_v)

        # q_h @ k_h^T, contracting over d_k (no explicit transpose)
        s = lax.dot_general(q_h, k_h, (((1,), (1,)), ((), ())),
                            preferred_element_type=jnp.float32)     # (nq, nk)
        if has_weights:
            s = s * aw_ref[0, i]
        if has_mask:
            s = jnp.where(am_ref[0, i] > 0, neg_big, s)

        # softmax over keys (matches torch.softmax(att, -1))
        s_max = jnp.max(s, axis=-1, keepdims=True)
        p = jnp.exp(s - s_max)
        denom = jnp.sum(p, axis=-1, keepdims=True)
        att = p * pl.reciprocal(denom, approx=False)   # exact; approx=True only
                                                       # pays off at real sizes

        # TODO(synk): nn.Dropout(0.1) is identity in eval mode; training-mode
        # dropout would use pltpu.prng_seed + pltpu.stateful_bernoulli here.

        o_h = jnp.dot(att, v_h, preferred_element_type=jnp.float32)   # (nq, d_v)
        out = out + jnp.dot(o_h, wo_ref[i * d_v:(i + 1) * d_v, :],
                            preferred_element_type=jnp.float32)

    o_ref[0] = out.astype(o_ref.dtype)


# ----------------------------------------------------------------------------
# Wrapper: single pallas_call over the batch axis
# ----------------------------------------------------------------------------
def scaled_dot_product_attention(params, queries, keys, values, d_k, d_v, h,
                                 attention_mask=None, attention_weights=None):
    b_s, nq, d_model = queries.shape
    nk = keys.shape[1]
    dtype = queries.dtype
    has_mask = attention_mask is not None
    has_weights = attention_weights is not None

    kern = functools.partial(
        _fused_mha_kernel, h=h, d_k=d_k, d_v=d_v,
        scale=1.0 / math.sqrt(d_k),
        has_weights=has_weights, has_mask=has_mask)

    def full(shp):
        return pl.BlockSpec(shp, lambda b: (0,) * len(shp))

    in_specs = [
        pl.BlockSpec((1, nq, d_model), lambda b: (b, 0, 0)),
        pl.BlockSpec((1, nk, d_model), lambda b: (b, 0, 0)),
        pl.BlockSpec((1, nk, d_model), lambda b: (b, 0, 0)),
        full(params["wq"].shape), full(params["bq"].shape),
        full(params["wk"].shape), full(params["bk"].shape),
        full(params["wv"].shape), full(params["bv"].shape),
        full(params["wo"].shape), full(params["bo"].shape),
    ]
    args = [queries, keys, values,
            params["wq"], params["bq"], params["wk"], params["bk"],
            params["wv"], params["bv"], params["wo"], params["bo"]]

    if has_weights:
        in_specs.append(pl.BlockSpec((1, h, nq, nk), lambda b: (b, 0, 0, 0)))
        args.append(attention_weights.astype(jnp.float32))
    if has_mask:
        # TODO(synk): at real sizes pass the mask as int8 (or per-row valid
        # lengths via scalar prefetch) to cut mask DMA/VMEM 4x.
        in_specs.append(pl.BlockSpec((1, h, nq, nk), lambda b: (b, 0, 0, 0)))
        args.append(attention_mask.astype(jnp.float32))

    return pl.pallas_call(
        kern,
        out_shape=jax.ShapeDtypeStruct((b_s, nq, d_model), dtype),
        grid=(b_s,),
        in_specs=in_specs,
        out_specs=pl.BlockSpec((1, nq, d_model), lambda b: (b, 0, 0)),
        compiler_params=pltpu.CompilerParams(
            dimension_semantics=("parallel",)),
    )(*args)


# ----------------------------------------------------------------------------
# Parameter init (matches init_weights: Linear ~ N(0, 0.001), bias = 0)
# ----------------------------------------------------------------------------
def init_params(key, d_model, d_k, d_v, h, dtype=jnp.float32):
    ks = jax.random.split(key, 4)

    def lin(k_, din, dout):
        w = (0.001 * jax.random.normal(k_, (din, dout))).astype(dtype)
        b = jnp.zeros((1, dout), dtype)
        return w, b

    wq, bq = lin(ks[0], d_model, h * d_k)
    wk, bk = lin(ks[1], d_model, h * d_k)
    wv, bv = lin(ks[2], d_model, h * d_v)
    wo, bo = lin(ks[3], h * d_v, d_model)
    return dict(wq=wq, bq=bq, wk=wk, bk=bk, wv=wv, bv=bv, wo=wo, bo=bo)


# ----------------------------------------------------------------------------
# Pure-JAX reference (mirrors the torch forward)
# ----------------------------------------------------------------------------
def reference(params, queries, keys, values, d_k, d_v, h,
              attention_mask=None, attention_weights=None):
    b_s, nq, d_model = queries.shape
    nk = keys.shape[1]
    q = (queries @ params["wq"] + params["bq"]).reshape(b_s, nq, h, d_k).transpose(0, 2, 1, 3)
    k = (keys @ params["wk"] + params["bk"]).reshape(b_s, nk, h, d_k).transpose(0, 2, 3, 1)
    v = (values @ params["wv"] + params["bv"]).reshape(b_s, nk, h, d_v).transpose(0, 2, 1, 3)
    att = jnp.matmul(q, k) / np.sqrt(d_k)
    if attention_weights is not None:
        att = att * attention_weights
    if attention_mask is not None:
        att = jnp.where(attention_mask, -jnp.inf, att)
    att = jax.nn.softmax(att, axis=-1)
    out = jnp.matmul(att, v).transpose(0, 2, 1, 3).reshape(b_s, nq, h * d_v)
    return (out @ params["wo"] + params["bo"]).reshape(b_s, nq, d_model)


if __name__ == "__main__":
    d_model, d_k, d_v, h = 32, 16, 16, 4
    b_s, nq, nk = 2, 8, 8

    key = jax.random.PRNGKey(0)
    kp, kq, kk, kv, km, kw = jax.random.split(key, 6)
    params = init_params(kp, d_model, d_k, d_v, h)

    queries = jax.random.normal(kq, (b_s, nq, d_model), jnp.float32)
    keys = jax.random.normal(kk, (b_s, nk, d_model), jnp.float32)
    values = jax.random.normal(kv, (b_s, nk, d_model), jnp.float32)

    # 1) default path: no mask / weights -> no dummy tensors are built or DMA'd
    out = scaled_dot_product_attention(params, queries, keys, values, d_k, d_v, h)
    out = jax.block_until_ready(out)
    ref = reference(params, queries, keys, values, d_k, d_v, h)
    np.testing.assert_allclose(np.asarray(out), np.asarray(ref), rtol=1e-5, atol=1e-5)

    # 2) masked + weighted path (column 0 kept unmasked so no row is fully masked,
    #    matching the torch module's well-defined regime)
    mask = jax.random.bernoulli(km, 0.3, (b_s, h, nq, nk))
    mask = mask.at[..., 0].set(False)
    att_w = 0.5 + jax.random.uniform(kw, (b_s, h, nq, nk), dtype=jnp.float32)
    out_m = scaled_dot_product_attention(
        params, queries, keys, values, d_k, d_v, h,
        attention_mask=mask, attention_weights=att_w)
    out_m = jax.block_until_ready(out_m)
    ref_m = reference(params, queries, keys, values, d_k, d_v, h,
                      attention_mask=mask, attention_weights=att_w)
    np.testing.assert_allclose(np.asarray(out_m), np.asarray(ref_m),
                               rtol=1e-5, atol=1e-5)

    print("KERNEL_OK")
</pallas_src>

<mosaic_0001>
module attributes {stable_mosaic.version = 11 : i64} {
  func.func @_fused_mha_kernel(%arg0: i32, %arg1: memref<1x8x32xf32, #tpu.memory_space<vmem>>, %arg2: memref<1x8x32xf32, #tpu.memory_space<vmem>>, %arg3: memref<1x8x32xf32, #tpu.memory_space<vmem>>, %arg4: memref<32x64xf32, #tpu.memory_space<vmem>>, %arg5: memref<1x64xf32, #tpu.memory_space<vmem>>, %arg6: memref<32x64xf32, #tpu.memory_space<vmem>>, %arg7: memref<1x64xf32, #tpu.memory_space<vmem>>, %arg8: memref<32x64xf32, #tpu.memory_space<vmem>>, %arg9: memref<1x64xf32, #tpu.memory_space<vmem>>, %arg10: memref<64x32xf32, #tpu.memory_space<vmem>>, %arg11: memref<1x32xf32, #tpu.memory_space<vmem>>, %arg12: memref<1x8x32xf32, #tpu.memory_space<vmem>>) attributes {dimension_semantics = [#tpu.dimension_semantics<parallel>], iteration_bounds = array<i64: 2>, scalar_prefetch = 0 : i64, scratch_operands = 0 : i64, tpu.core_type = #tpu.core_type<tc>, window_params = [{transform_indices = @transform_0, window_bounds = array<i64: 1, 8, 32>}, {transform_indices = @transform_1, window_bounds = array<i64: 1, 8, 32>}, {transform_indices = @transform_2, window_bounds = array<i64: 1, 8, 32>}, {pipeline_mode = #tpu.pipeline_mode<synchronous>, transform_indices = @transform_3, window_bounds = array<i64: 32, 64>}, {pipeline_mode = #tpu.pipeline_mode<synchronous>, transform_indices = @transform_4, window_bounds = array<i64: 1, 64>}, {pipeline_mode = #tpu.pipeline_mode<synchronous>, transform_indices = @transform_5, window_bounds = array<i64: 32, 64>}, {pipeline_mode = #tpu.pipeline_mode<synchronous>, transform_indices = @transform_6, window_bounds = array<i64: 1, 64>}, {pipeline_mode = #tpu.pipeline_mode<synchronous>, transform_indices = @transform_7, window_bounds = array<i64: 32, 64>}, {pipeline_mode = #tpu.pipeline_mode<synchronous>, transform_indices = @transform_8, window_bounds = array<i64: 1, 64>}, {pipeline_mode = #tpu.pipeline_mode<synchronous>, transform_indices = @transform_9, window_bounds = array<i64: 64, 32>}, {pipeline_mode = #tpu.pipeline_mode<synchronous>, transform_indices = @transform_10, window_bounds = array<i64: 1, 32>}, {transform_indices = @transform_11, window_bounds = array<i64: 1, 8, 32>}]} {
    %c0 = arith.constant 0 : index
    %c0_0 = arith.constant 0 : index
    %c0_1 = arith.constant 0 : index
    %0 = vector.load %arg1[%c0, %c0_0, %c0_1] : memref<1x8x32xf32, #tpu.memory_space<vmem>>, vector<1x8x32xf32>
    %1 = vector.shape_cast %0 : vector<1x8x32xf32> to vector<8x32xf32>
    %c0_2 = arith.constant 0 : index
    %c0_3 = arith.constant 0 : index
    %c0_4 = arith.constant 0 : index
    %2 = vector.load %arg2[%c0_2, %c0_3, %c0_4] : memref<1x8x32xf32, #tpu.memory_space<vmem>>, vector<1x8x32xf32>
    %3 = vector.shape_cast %2 : vector<1x8x32xf32> to vector<8x32xf32>
    %c0_5 = arith.constant 0 : index
    %c0_6 = arith.constant 0 : index
    %c0_7 = arith.constant 0 : index
    %4 = vector.load %arg3[%c0_5, %c0_6, %c0_7] : memref<1x8x32xf32, #tpu.memory_space<vmem>>, vector<1x8x32xf32>
    %5 = vector.shape_cast %4 : vector<1x8x32xf32> to vector<8x32xf32>
    %c0_8 = arith.constant 0 : index
    %c0_9 = arith.constant 0 : index
    %6 = vector.load %arg4[%c0_8, %c0_9] : memref<32x64xf32, #tpu.memory_space<vmem>>, vector<32x64xf32>
    %cst = arith.constant dense<0.000000e+00> : vector<8x64xf32>
    %7 = tpu.matmul %1, %6, %cst {dimension_numbers = #tpu.dot_dimension_numbers<[1], [0], [0], [1], [0, 0, 1, 1], [], []>} : vector<8x32xf32>, vector<32x64xf32>, vector<8x64xf32> -> vector<8x64xf32>
    %c0_10 = arith.constant 0 : index
    %c0_11 = arith.constant 0 : index
    %8 = vector.load %arg5[%c0_10, %c0_11] : memref<1x64xf32, #tpu.memory_space<vmem>>, vector<1x64xf32>
    %9 = vector.broadcast %8 : vector<1x64xf32> to vector<8x64xf32>
    %10 = arith.addf %7, %9 : vector<8x64xf32>
    %cst_12 = arith.constant 2.500000e-01 : f32
    %11 = vector.broadcast %cst_12 : f32 to vector<8x64xf32>
    %12 = arith.mulf %10, %11 : vector<8x64xf32>
    %c0_13 = arith.constant 0 : index
    %c0_14 = arith.constant 0 : index
    %13 = vector.load %arg6[%c0_13, %c0_14] : memref<32x64xf32, #tpu.memory_space<vmem>>, vector<32x64xf32>
    %cst_15 = arith.constant dense<0.000000e+00> : vector<8x64xf32>
    %14 = tpu.matmul %3, %13, %cst_15 {dimension_numbers = #tpu.dot_dimension_numbers<[1], [0], [0], [1], [0, 0, 1, 1], [], []>} : vector<8x32xf32>, vector<32x64xf32>, vector<8x64xf32> -> vector<8x64xf32>
    %c0_16 = arith.constant 0 : index
    %c0_17 = arith.constant 0 : index
    %15 = vector.load %arg7[%c0_16, %c0_17] : memref<1x64xf32, #tpu.memory_space<vmem>>, vector<1x64xf32>
    %16 = vector.broadcast %15 : vector<1x64xf32> to vector<8x64xf32>
    %17 = arith.addf %14, %16 : vector<8x64xf32>
    %c0_18 = arith.constant 0 : index
    %c0_19 = arith.constant 0 : index
    %18 = vector.load %arg8[%c0_18, %c0_19] : memref<32x64xf32, #tpu.memory_space<vmem>>, vector<32x64xf32>
    %cst_20 = arith.constant dense<0.000000e+00> : vector<8x64xf32>
    %19 = tpu.matmul %5, %18, %cst_20 {dimension_numbers = #tpu.dot_dimension_numbers<[1], [0], [0], [1], [0, 0, 1, 1], [], []>} : vector<8x32xf32>, vector<32x64xf32>, vector<8x64xf32> -> vector<8x64xf32>
    %c0_21 = arith.constant 0 : index
    %c0_22 = arith.constant 0 : index
    %20 = vector.load %arg9[%c0_21, %c0_22] : memref<1x64xf32, #tpu.memory_space<vmem>>, vector<1x64xf32>
    %21 = vector.broadcast %20 : vector<1x64xf32> to vector<8x64xf32>
    %22 = arith.addf %19, %21 : vector<8x64xf32>
    %c0_23 = arith.constant 0 : index
    %c0_24 = arith.constant 0 : index
    %23 = vector.load %arg11[%c0_23, %c0_24] : memref<1x32xf32, #tpu.memory_space<vmem>>, vector<1x32xf32>
    %24 = vector.extract_strided_slice %12 {offsets = [0, 0], sizes = [8, 16], strides = [1, 1]} : vector<8x64xf32> to vector<8x16xf32>
    %25 = vector.extract_strided_slice %17 {offsets = [0, 0], sizes = [8, 16], strides = [1, 1]} : vector<8x64xf32> to vector<8x16xf32>
    %26 = vector.extract_strided_slice %22 {offsets = [0, 0], sizes = [8, 16], strides = [1, 1]} : vector<8x64xf32> to vector<8x16xf32>
    %cst_25 = arith.constant dense<0.000000e+00> : vector<8x8xf32>
    %27 = tpu.matmul %24, %25, %cst_25 {dimension_numbers = #tpu.dot_dimension_numbers<[1], [1], [0], [0], [0, 0, 1, 0], [], []>} : vector<8x16xf32>, vector<8x16xf32>, vector<8x8xf32> -> vector<8x8xf32>
    %cst_26 = arith.constant dense<0xFF800000> : vector<8xf32>
    %28 = vector.multi_reduction <maximumf>, %27, %cst_26 [1] : vector<8x8xf32> to vector<8xf32>
    %29 = vector.shape_cast %28 : vector<8xf32> to vector<8x1xf32>
    %30 = vector.broadcast %29 : vector<8x1xf32> to vector<8x8xf32>
    %31 = arith.subf %27, %30 : vector<8x8xf32>
    %32 = math.exp %31 : vector<8x8xf32>
    %cst_27 = arith.constant dense<0.000000e+00> : vector<8xf32>
    %33 = vector.multi_reduction <add>, %32, %cst_27 [1] : vector<8x8xf32> to vector<8xf32>
    %34 = vector.shape_cast %33 : vector<8xf32> to vector<8x1xf32>
    %35 = tpu.reciprocal %34 : vector<8x1xf32> -> vector<8x1xf32>
    %36 = vector.broadcast %35 : vector<8x1xf32> to vector<8x8xf32>
    %37 = arith.mulf %32, %36 : vector<8x8xf32>
    %cst_28 = arith.constant dense<0.000000e+00> : vector<8x16xf32>
    %38 = tpu.matmul %37, %26, %cst_28 {dimension_numbers = #tpu.dot_dimension_numbers<[1], [0], [0], [1], [0, 0, 1, 1], [], []>} : vector<8x8xf32>, vector<8x16xf32>, vector<8x16xf32> -> vector<8x16xf32>
    %c0_29 = arith.constant 0 : index
    %c0_30 = arith.constant 0 : index
    %39 = vector.load %arg10[%c0_29, %c0_30] : memref<64x32xf32, #tpu.memory_space<vmem>>, vector<16x32xf32>
    %cst_31 = arith.constant dense<0.000000e+00> : vector<8x32xf32>
    %40 = tpu.matmul %38, %39, %cst_31 {dimension_numbers = #tpu.dot_dimension_numbers<[1], [0], [0], [1], [0, 0, 1, 1], [], []>} : vector<8x16xf32>, vector<16x32xf32>, vector<8x32xf32> -> vector<8x32xf32>
    %41 = vector.broadcast %23 : vector<1x32xf32> to vector<8x32xf32>
    %42 = arith.addf %41, %40 : vector<8x32xf32>
    %43 = vector.extract_strided_slice %12 {offsets = [0, 16], sizes = [8, 16], strides = [1, 1]} : vector<8x64xf32> to vector<8x16xf32>
    %44 = vector.extract_strided_slice %17 {offsets = [0, 16], sizes = [8, 16], strides = [1, 1]} : vector<8x64xf32> to vector<8x16xf32>
    %45 = vector.extract_strided_slice %22 {offsets = [0, 16], sizes = [8, 16], strides = [1, 1]} : vector<8x64xf32> to vector<8x16xf32>
    %cst_32 = arith.constant dense<0.000000e+00> : vector<8x8xf32>
    %46 = tpu.matmul %43, %44, %cst_32 {dimension_numbers = #tpu.dot_dimension_numbers<[1], [1], [0], [0], [0, 0, 1, 0], [], []>} : vector<8x16xf32>, vector<8x16xf32>, vector<8x8xf32> -> vector<8x8xf32>
    %cst_33 = arith.constant dense<0xFF800000> : vector<8xf32>
    %47 = vector.multi_reduction <maximumf>, %46, %cst_33 [1] : vector<8x8xf32> to vector<8xf32>
    %48 = vector.shape_cast %47 : vector<8xf32> to vector<8x1xf32>
    %49 = vector.broadcast %48 : vector<8x1xf32> to vector<8x8xf32>
    %50 = arith.subf %46, %49 : vector<8x8xf32>
    %51 = math.exp %50 : vector<8x8xf32>
    %cst_34 = arith.constant dense<0.000000e+00> : vector<8xf32>
    %52 = vector.multi_reduction <add>, %51, %cst_34 [1] : vector<8x8xf32> to vector<8xf32>
    %53 = vector.shape_cast %52 : vector<8xf32> to vector<8x1xf32>
    %54 = tpu.reciprocal %53 : vector<8x1xf32> -> vector<8x1xf32>
    %55 = vector.broadcast %54 : vector<8x1xf32> to vector<8x8xf32>
    %56 = arith.mulf %51, %55 : vector<8x8xf32>
    %cst_35 = arith.constant dense<0.000000e+00> : vector<8x16xf32>
    %57 = tpu.matmul %56, %45, %cst_35 {dimension_numbers = #tpu.dot_dimension_numbers<[1], [0], [0], [1], [0, 0, 1, 1], [], []>} : vector<8x8xf32>, vector<8x16xf32>, vector<8x16xf32> -> vector<8x16xf32>
    %c16 = arith.constant 16 : index
    %c0_36 = arith.constant 0 : index
    %58 = vector.load %arg10[%c16, %c0_36] : memref<64x32xf32, #tpu.memory_space<vmem>>, vector<16x32xf32>
    %cst_37 = arith.constant dense<0.000000e+00> : vector<8x32xf32>
    %59 = tpu.matmul %57, %58, %cst_37 {dimension_numbers = #tpu.dot_dimension_numbers<[1], [0], [0], [1], [0, 0, 1, 1], [], []>} : vector<8x16xf32>, vector<16x32xf32>, vector<8x32xf32> -> vector<8x32xf32>
    %60 = arith.addf %42, %59 : vector<8x32xf32>
    %61 = vector.extract_strided_slice %12 {offsets = [0, 32], sizes = [8, 16], strides = [1, 1]} : vector<8x64xf32> to vector<8x16xf32>
    %62 = vector.extract_strided_slice %17 {offsets = [0, 32], sizes = [8, 16], strides = [1, 1]} : vector<8x64xf32> to vector<8x16xf32>
    %63 = vector.extract_strided_slice %22 {offsets = [0, 32], sizes = [8, 16], strides = [1, 1]} : vector<8x64xf32> to vector<8x16xf32>
    %cst_38 = arith.constant dense<0.000000e+00> : vector<8x8xf32>
    %64 = tpu.matmul %61, %62, %cst_38 {dimension_numbers = #tpu.dot_dimension_numbers<[1], [1], [0], [0], [0, 0, 1, 0], [], []>} : vector<8x16xf32>, vector<8x16xf32>, vector<8x8xf32> -> vector<8x8xf32>
    %cst_39 = arith.constant dense<0xFF800000> : vector<8xf32>
    %65 = vector.multi_reduction <maximumf>, %64, %cst_39 [1] : vector<8x8xf32> to vector<8xf32>
    %66 = vector.shape_cast %65 : vector<8xf32> to vector<8x1xf32>
    %67 = vector.broadcast %66 : vector<8x1xf32> to vector<8x8xf32>
    %68 = arith.subf %64, %67 : vector<8x8xf32>
    %69 = math.exp %68 : vector<8x8xf32>
    %cst_40 = arith.constant dense<0.000000e+00> : vector<8xf32>
    %70 = vector.multi_reduction <add>, %69, %cst_40 [1] : vector<8x8xf32> to vector<8xf32>
    %71 = vector.shape_cast %70 : vector<8xf32> to vector<8x1xf32>
    %72 = tpu.reciprocal %71 : vector<8x1xf32> -> vector<8x1xf32>
    %73 = vector.broadcast %72 : vector<8x1xf32> to vector<8x8xf32>
    %74 = arith.mulf %69, %73 : vector<8x8xf32>
    %cst_41 = arith.constant dense<0.000000e+00> : vector<8x16xf32>
    %75 = tpu.matmul %74, %63, %cst_41 {dimension_numbers = #tpu.dot_dimension_numbers<[1], [0], [0], [1], [0, 0, 1, 1], [], []>} : vector<8x8xf32>, vector<8x16xf32>, vector<8x16xf32> -> vector<8x16xf32>
    %c32 = arith.constant 32 : index
    %c0_42 = arith.constant 0 : index
    %76 = vector.load %arg10[%c32, %c0_42] : memref<64x32xf32, #tpu.memory_space<vmem>>, vector<16x32xf32>
    %cst_43 = arith.constant dense<0.000000e+00> : vector<8x32xf32>
    %77 = tpu.matmul %75, %76, %cst_43 {dimension_numbers = #tpu.dot_dimension_numbers<[1], [0], [0], [1], [0, 0, 1, 1], [], []>} : vector<8x16xf32>, vector<16x32xf32>, vector<8x32xf32> -> vector<8x32xf32>
    %78 = arith.addf %60, %77 : vector<8x32xf32>
    %79 = vector.extract_strided_slice %12 {offsets = [0, 48], sizes = [8, 16], strides = [1, 1]} : vector<8x64xf32> to vector<8x16xf32>
    %80 = vector.extract_strided_slice %17 {offsets = [0, 48], sizes = [8, 16], strides = [1, 1]} : vector<8x64xf32> to vector<8x16xf32>
    %81 = vector.extract_strided_slice %22 {offsets = [0, 48], sizes = [8, 16], strides = [1, 1]} : vector<8x64xf32> to vector<8x16xf32>
    %cst_44 = arith.constant dense<0.000000e+00> : vector<8x8xf32>
    %82 = tpu.matmul %79, %80, %cst_44 {dimension_numbers = #tpu.dot_dimension_numbers<[1], [1], [0], [0], [0, 0, 1, 0], [], []>} : vector<8x16xf32>, vector<8x16xf32>, vector<8x8xf32> -> vector<8x8xf32>
    %cst_45 = arith.constant dense<0xFF800000> : vector<8xf32>
    %83 = vector.multi_reduction <maximumf>, %82, %cst_45 [1] : vector<8x8xf32> to vector<8xf32>
    %84 = vector.shape_cast %83 : vector<8xf32> to vector<8x1xf32>
    %85 = vector.broadcast %84 : vector<8x1xf32> to vector<8x8xf32>
    %86 = arith.subf %82, %85 : vector<8x8xf32>
    %87 = math.exp %86 : vector<8x8xf32>
    %cst_46 = arith.constant dense<0.000000e+00> : vector<8xf32>
    %88 = vector.multi_reduction <add>, %87, %cst_46 [1] : vector<8x8xf32> to vector<8xf32>
    %89 = vector.shape_cast %88 : vector<8xf32> to vector<8x1xf32>
    %90 = tpu.reciprocal %89 : vector<8x1xf32> -> vector<8x1xf32>
    %91 = vector.broadcast %90 : vector<8x1xf32> to vector<8x8xf32>
    %92 = arith.mulf %87, %91 : vector<8x8xf32>
    %cst_47 = arith.constant dense<0.000000e+00> : vector<8x16xf32>
    %93 = tpu.matmul %92, %81, %cst_47 {dimension_numbers = #tpu.dot_dimension_numbers<[1], [0], [0], [1], [0, 0, 1, 1], [], []>} : vector<8x8xf32>, vector<8x16xf32>, vector<8x16xf32> -> vector<8x16xf32>
    %c48 = arith.constant 48 : index
    %c0_48 = arith.constant 0 : index
    %94 = vector.load %arg10[%c48, %c0_48] : memref<64x32xf32, #tpu.memory_space<vmem>>, vector<16x32xf32>
    %cst_49 = arith.constant dense<0.000000e+00> : vector<8x32xf32>
    %95 = tpu.matmul %93, %94, %cst_49 {dimension_numbers = #tpu.dot_dimension_numbers<[1], [0], [0], [1], [0, 0, 1, 1], [], []>} : vector<8x16xf32>, vector<16x32xf32>, vector<8x32xf32> -> vector<8x32xf32>
    %96 = arith.addf %78, %95 : vector<8x32xf32>
    %c0_50 = arith.constant 0 : index
    %c0_51 = arith.constant 0 : index
    %c0_52 = arith.constant 0 : index
    %97 = vector.load %arg12[%c0_50, %c0_51, %c0_52] : memref<1x8x32xf32, #tpu.memory_space<vmem>>, vector<1x8x32xf32>
    %98 = vector.shape_cast %97 : vector<1x8x32xf32> to vector<8x32xf32>
    %99 = vector.shape_cast %96 : vector<8x32xf32> to vector<1x8x32xf32>
    tpu.vector_store %arg12[%c0_50, %c0_51, %c0_52], %99 {strides = array<i32>} : memref<1x8x32xf32, #tpu.memory_space<vmem>>, vector<1x8x32xf32>,
    return
  }
  func.func @transform_0(%arg0: i32) -> (i32, i32, i32) {
    %c0_i32 = arith.constant 0 : i32
    %c0_i32_0 = arith.constant 0 : i32
    %c0_i32_1 = arith.constant 0 : i32
    return %arg0, %c0_i32, %c0_i32_0 : i32, i32, i32
  }
  func.func @transform_1(%arg0: i32) -> (i32, i32, i32) {
    %c0_i32 = arith.constant 0 : i32
    %c0_i32_0 = arith.constant 0 : i32
    %c0_i32_1 = arith.constant 0 : i32
    return %arg0, %c0_i32, %c0_i32_0 : i32, i32, i32
  }
  func.func @transform_2(%arg0: i32) -> (i32, i32, i32) {
    %c0_i32 = arith.constant 0 : i32
    %c0_i32_0 = arith.constant 0 : i32
    %c0_i32_1 = arith.constant 0 : i32
    return %arg0, %c0_i32, %c0_i32_0 : i32, i32, i32
  }
  func.func @transform_3(%arg0: i32) -> (i32, i32) {
    %c0_i32 = arith.constant 0 : i32
    %c0_i32_0 = arith.constant 0 : i32
    %c0_i32_1 = arith.constant 0 : i32
    return %c0_i32, %c0_i32_0 : i32, i32
  }
  func.func @transform_4(%arg0: i32) -> (i32, i32) {
    %c0_i32 = arith.constant 0 : i32
    %c0_i32_0 = arith.constant 0 : i32
    %c0_i32_1 = arith.constant 0 : i32
    return %c0_i32, %c0_i32_0 : i32, i32
  }
  func.func @transform_5(%arg0: i32) -> (i32, i32) {
    %c0_i32 = arith.constant 0 : i32
    %c0_i32_0 = arith.constant 0 : i32
    %c0_i32_1 = arith.constant 0 : i32
    return %c0_i32, %c0_i32_0 : i32, i32
  }
  func.func @transform_6(%arg0: i32) -> (i32, i32) {
    %c0_i32 = arith.constant 0 : i32
    %c0_i32_0 = arith.constant 0 : i32
    %c0_i32_1 = arith.constant 0 : i32
    return %c0_i32, %c0_i32_0 : i32, i32
  }
  func.func @transform_7(%arg0: i32) -> (i32, i32) {
    %c0_i32 = arith.constant 0 : i32
    %c0_i32_0 = arith.constant 0 : i32
    %c0_i32_1 = arith.constant 0 : i32
    return %c0_i32, %c0_i32_0 : i32, i32
  }
  func.func @transform_8(%arg0: i32) -> (i32, i32) {
    %c0_i32 = arith.constant 0 : i32
    %c0_i32_0 = arith.constant 0 : i32
    %c0_i32_1 = arith.constant 0 : i32
    return %c0_i32, %c0_i32_0 : i32, i32
  }
  func.func @transform_9(%arg0: i32) -> (i32, i32) {
    %c0_i32 = arith.constant 0 : i32
    %c0_i32_0 = arith.constant 0 : i32
    %c0_i32_1 = arith.constant 0 : i32
    return %c0_i32, %c0_i32_0 : i32, i32
  }
  func.func @transform_10(%arg0: i32) -> (i32, i32) {
    %c0_i32 = arith.constant 0 : i32
    %c0_i32_0 = arith.constant 0 : i32
    %c0_i32_1 = arith.constant 0 : i32
    return %c0_i32, %c0_i32_0 : i32, i32
  }
  func.func @transform_11(%arg0: i32) -> (i32, i32, i32) {
    %c0_i32 = arith.constant 0 : i32
    %c0_i32_0 = arith.constant 0 : i32
    %c0_i32_1 = arith.constant 0 : i32
    return %arg0, %c0_i32, %c0_i32_0 : i32, i32, i32
  }
}

</mosaic_0001>

<llo_original>
// kernel: tpu_custom_call.1
$region0: #{tpu_custom_call.1}
  #allocation0 [shape = 'u32[]', space=smem, size = 0x4, offset = 0x4, fixed_abs, tag = 'smem constant byte address 0x4 - core index']
  #allocation1 [shape = 'u32[72,128]{1,0:T(1,128)}', space=vmem, size = 0x9000, scoped, tag = 'internal scratch']
  %s0 = inlined_call_operand.hbm [shape: f32[2,8,32], index: 0, kind: input, shape index: {}]
  %s1 = inlined_call_operand.hbm [shape: f32[2,8,32], index: 1, kind: input, shape index: {}]
  %s2 = inlined_call_operand.hbm [shape: f32[2,8,32], index: 2, kind: input, shape index: {}]
  %s3 = inlined_call_operand.vmem [shape: f32[32,64], index: 3, kind: input, shape index: {}]
  %s4 = inlined_call_operand.vmem [shape: f32[1,64], index: 4, kind: input, shape index: {}]
  %s5 = inlined_call_operand.vmem [shape: f32[32,64], index: 5, kind: input, shape index: {}]
  %s6 = inlined_call_operand.vmem [shape: f32[1,64], index: 6, kind: input, shape index: {}]
  %s7 = inlined_call_operand.vmem [shape: f32[32,64], index: 7, kind: input, shape index: {}]
  %s8 = inlined_call_operand.vmem [shape: f32[1,64], index: 8, kind: input, shape index: {}]
  %s9 = inlined_call_operand.vmem [shape: f32[64,32], index: 9, kind: input, shape index: {}]
  %s10 = inlined_call_operand.vmem [shape: f32[1,32], index: 10, kind: input, shape index: {}]
  %s11 = inlined_call_operand.hbm [shape: f32[2,8,32], index: 11, kind: output, shape index: {}]
  %s12 = sld [smem:[#allocation0]]
  $region89: #{tpu_custom_call.1} parent=0
    _
  %s14 = ssub.s32 1, %s12
  %s15 = scalar_select 0, %s14, %s12
  $region1: #{tpu_custom_call.1} parent=0
    #allocation2 [shape = 'u8[8192]{0}', space=vmem, size = 0x2000, scoped, tag = 'input window, operand 0']
    #allocation3 [shape = 's32[2]{0}', space=sflag, size = 0x8, scoped, tag = 'scoped memory for tpu_custom_call.1']
    #allocation4 [shape = 's32[2]{0}', space=sflag, size = 0x8, scoped, tag = 'scoped memory for tpu_custom_call.1']
    #allocation5 [shape = 'u8[8192]{0}', space=vmem, size = 0x2000, scoped, tag = 'input window, operand 1']
    #allocation6 [shape = 's32[2]{0}', space=sflag, size = 0x8, scoped, tag = 'scoped memory for tpu_custom_call.1']
    #allocation7 [shape = 'u8[8192]{0}', space=vmem, size = 0x2000, scoped, tag = 'input window, operand 2']
    #allocation8 [shape = 'u8[8192]{0}', space=vmem, size = 0x2000, scoped, tag = 'output window, operand 0']
    %16 = vsyncpa [#allocation3], 0
    %s17 = scalar_lea.sflag [#allocation3], 1
    %18 = vsyncpa %s17, 0
    %19 = vsyncpa [#allocation6], 0
    %s20 = scalar_lea.sflag [#allocation6], 1
    %21 = vsyncpa %s20, 0
    %22 = vsyncpa [#allocation4], 0
    %s23 = scalar_lea.sflag [#allocation4], 1
    %24 = vsyncpa %s23, 0
    loop: start=0, step=1, limit=4
    $region2: #{tpu_custom_call.1} parent=1 // loop_pre_header
      _
    $region3: #{tpu_custom_call.1} parent=1 // loop_header
      %s26 = sphi 0, %s30
      %p27 = scmp.ge.s32.totalorder %s26, 4
      %s36 = sphi 0, %s38
      %s39 = sphi 0, %s36
      %s40 = sphi 0, %s39
      %s56 = sphi 0, %s40
      %s62 = sphi 0, %s64
      %s65 = sphi 0, %s62
      %s66 = sphi 0, %s65
      %s82 = sphi 0, %s66
      %s88 = sphi 0, %s90
      %s91 = sphi 0, %s88
      %s92 = sphi 0, %s91
      %s108 = sphi 0, %s92
      %s112 = sphi 0, %s112
      %s114 = sphi 0, %s112
      %s115 = sphi 0, %s114
      %s129 = sphi 0, %s115
      %s133 = sphi 0, %s133
      %s135 = sphi 0, %s133
      %s136 = sphi 0, %s135
      %s150 = sphi 0, %s136
      %s154 = sphi 0, %s154
      %s156 = sphi 0, %s154
      %s157 = sphi 0, %s156
      %s171 = sphi 0, %s157
      %s175 = sphi 0, %s175
      %s177 = sphi 0, %s175
      %s178 = sphi 0, %s177
      %s192 = sphi 0, %s178
      %s196 = sphi 0, %s196
      %s198 = sphi 0, %s196
      %s199 = sphi 0, %s198
      %s213 = sphi 0, %s199
      %s217 = sphi 0, %s217
      %s219 = sphi 0, %s217
      %s220 = sphi 0, %s219
      %s234 = sphi 0, %s220
      %s238 = sphi 0, %s238
      %s240 = sphi 0, %s238
      %s241 = sphi 0, %s240
      %s255 = sphi 0, %s241
      %s259 = sphi 0, %s259
      %s261 = sphi 0, %s259
      %s262 = sphi 0, %s261
      %s276 = sphi 0, %s262
      %s282 = sphi 0, %s284
      %s285 = sphi 0, %s282
      %s286 = sphi 0, %s285
      %s302 = sphi 0, %s286
    $region4: #{tpu_custom_call.1} parent=1 // loop_header_branch
      %29 = sbr.rel (%p27) target = $region8
    $region5: #{tpu_custom_call.1} parent=1 // loop_body
      %s31 = ssub.s32 %s26, 1
      %s32 = ssub.s32 %s26, 2
      %s33 = sadd.s32 %s26, 1
      %s34 = ssub.s32 %s26, %s33
      %p35 = scmp.eq.s32.totalorder %s34, 0
      %s37 = sadd.s32 %s36, 1
      %s38 = scalar_select %p35, %s36, %s37
      %p41 = pneg %p35
      %p42 = scmp.eq.s32.totalorder %s26, 1
      %p43 = por %p41, %p42
      %p44 = scmp.ne.s32.totalorder %s36, %s39
      %p45 = scmp.eq.s32.totalorder %s26, 0
      %p46 = por %p44, %p45
      %p47 = scmp.ne.s32.totalorder %s36, %s39
      %p48 = scmp.eq.s32.totalorder %s31, 1
      %p49 = por %p47, %p48
      %p50 = scmp.ne.s32.totalorder %s39, %s40
      %p51 = scmp.eq.s32.totalorder %s31, 0
      %p52 = por %p50, %p51
      %p53 = scmp.ne.s32.totalorder %s39, %s40
      %p54 = scmp.eq.s32.totalorder %s32, 1
      %p55 = por %p53, %p54
      %p57 = scmp.ne.s32.totalorder %s40, %s56
      %p58 = scmp.eq.s32.totalorder %s32, 0
      %p59 = por %p57, %p58
      %s60 = ssub.s32 %s26, %s33
      %p61 = scmp.eq.s32.totalorder %s60, 0
      %s63 = sadd.s32 %s62, 1
      %s64 = scalar_select %p61, %s62, %s63
      %p67 = pneg %p61
      %p68 = scmp.eq.s32.totalorder %s26, 1
      %p69 = por %p67, %p68
      %p70 = scmp.ne.s32.totalorder %s62, %s65
      %p71 = scmp.eq.s32.totalorder %s26, 0
      %p72 = por %p70, %p71
      %p73 = scmp.ne.s32.totalorder %s62, %s65
      %p74 = scmp.eq.s32.totalorder %s31, 1
      %p75 = por %p73, %p74
      %p76 = scmp.ne.s32.totalorder %s65, %s66
      %p77 = scmp.eq.s32.totalorder %s31, 0
      %p78 = por %p76, %p77
      %p79 = scmp.ne.s32.totalorder %s65, %s66
      %p80 = scmp.eq.s32.totalorder %s32, 1
      %p81 = por %p79, %p80
      %p83 = scmp.ne.s32.totalorder %s66, %s82
      %p84 = scmp.eq.s32.totalorder %s32, 0
      %p85 = por %p83, %p84
      %s86 = ssub.s32 %s26, %s33
      %p87 = scmp.eq.s32.totalorder %s86, 0
      %s89 = sadd.s32 %s88, 1
      %s90 = scalar_select %p87, %s88, %s89
      %p93 = pneg %p87
      %p94 = scmp.eq.s32.totalorder %s26, 1
      %p95 = por %p93, %p94
      %p96 = scmp.ne.s32.totalorder %s88, %s91
      %p97 = scmp.eq.s32.totalorder %s26, 0
      %p98 = por %p96, %p97
      %p99 = scmp.ne.s32.totalorder %s88, %s91
      %p100 = scmp.eq.s32.totalorder %s31, 1
      %p101 = por %p99, %p100
      %p102 = scmp.ne.s32.totalorder %s91, %s92
      %p103 = scmp.eq.s32.totalorder %s31, 0
      %p104 = por %p102, %p103
      %p105 = scmp.ne.s32.totalorder %s91, %s92
      %p106 = scmp.eq.s32.totalorder %s32, 1
      %p107 = por %p105, %p106
      %p109 = scmp.ne.s32.totalorder %s92, %s108
      %p110 = scmp.eq.s32.totalorder %s32, 0
      %p111 = por %p109, %p110
      %s113 = sadd.s32 %s112, 1
      %p116 = scmp.eq.s32.totalorder %s26, 1
      %p117 = scmp.ne.s32.totalorder %s112, %s114
      %p118 = scmp.eq.s32.totalorder %s26, 0
      %p119 = por %p117, %p118
      %p120 = scmp.ne.s32.totalorder %s112, %s114
      %p121 = scmp.eq.s32.totalorder %s31, 1
      %p122 = por %p120, %p121
      %p123 = scmp.ne.s32.totalorder %s114, %s115
      %p124 = scmp.eq.s32.totalorder %s31, 0
      %p125 = por %p123, %p124
      %p126 = scmp.ne.s32.totalorder %s114, %s115
      %p127 = scmp.eq.s32.totalorder %s32, 1
      %p128 = por %p126, %p127
      %p130 = scmp.ne.s32.totalorder %s115, %s129
      %p131 = scmp.eq.s32.totalorder %s32, 0
      %p132 = por %p130, %p131
      %s134 = sadd.s32 %s133, 1
      %p137 = scmp.eq.s32.totalorder %s26, 1
      %p138 = scmp.ne.s32.totalorder %s133, %s135
      %p139 = scmp.eq.s32.totalorder %s26, 0
      %p140 = por %p138, %p139
      %p141 = scmp.ne.s32.totalorder %s133, %s135
      %p142 = scmp.eq.s32.totalorder %s31, 1
      %p143 = por %p141, %p142
      %p144 = scmp.ne.s32.totalorder %s135, %s136
      %p145 = scmp.eq.s32.totalorder %s31, 0
      %p146 = por %p144, %p145
      %p147 = scmp.ne.s32.totalorder %s135, %s136
      %p148 = scmp.eq.s32.totalorder %s32, 1
      %p149 = por %p147, %p148
      %p151 = scmp.ne.s32.totalorder %s136, %s150
      %p152 = scmp.eq.s32.totalorder %s32, 0
      %p153 = por %p151, %p152
      %s155 = sadd.s32 %s154, 1
      %p158 = scmp.eq.s32.totalorder %s26, 1
      %p159 = scmp.ne.s32.totalorder %s154, %s156
      %p160 = scmp.eq.s32.totalorder %s26, 0
      %p161 = por %p159, %p160
      %p162 = scmp.ne.s32.totalorder %s154, %s156
      %p163 = scmp.eq.s32.totalorder %s31, 1
      %p164 = por %p162, %p163
      %p165 = scmp.ne.s32.totalorder %s156, %s157
      %p166 = scmp.eq.s32.totalorder %s31, 0
      %p167 = por %p165, %p166
      %p168 = scmp.ne.s32.totalorder %s156, %s157
      %p169 = scmp.eq.s32.totalorder %s32, 1
      %p170 = por %p168, %p169
      %p172 = scmp.ne.s32.totalorder %s157, %s171
      %p173 = scmp.eq.s32.totalorder %s32, 0
      %p174 = por %p172, %p173
      %s176 = sadd.s32 %s175, 1
      %p179 = scmp.eq.s32.totalorder %s26, 1
      %p180 = scmp.ne.s32.totalorder %s175, %s177
      %p181 = scmp.eq.s32.totalorder %s26, 0
      %p182 = por %p180, %p181
      %p183 = scmp.ne.s32.totalorder %s175, %s177
      %p184 = scmp.eq.s32.totalorder %s31, 1
      %p185 = por %p183, %p184
      %p186 = scmp.ne.s32.totalorder %s177, %s178
      %p187 = scmp.eq.s32.totalorder %s31, 0
      %p188 = por %p186, %p187
      %p189 = scmp.ne.s32.totalorder %s177, %s178
      %p190 = scmp.eq.s32.totalorder %s32, 1
      %p191 = por %p189, %p190
      %p193 = scmp.ne.s32.totalorder %s178, %s192
      %p194 = scmp.eq.s32.totalorder %s32, 0
      %p195 = por %p193, %p194
      %s197 = sadd.s32 %s196, 1
      %p200 = scmp.eq.s32.totalorder %s26, 1
      %p201 = scmp.ne.s32.totalorder %s196, %s198
      %p202 = scmp.eq.s32.totalorder %s26, 0
      %p203 = por %p201, %p202
      %p204 = scmp.ne.s32.totalorder %s196, %s198
      %p205 = scmp.eq.s32.totalorder %s31, 1
      %p206 = por %p204, %p205
      %p207 = scmp.ne.s32.totalorder %s198, %s199
      %p208 = scmp.eq.s32.totalorder %s31, 0
      %p209 = por %p207, %p208
      %p210 = scmp.ne.s32.totalorder %s198, %s199
      %p211 = scmp.eq.s32.totalorder %s32, 1
      %p212 = por %p210, %p211
      %p214 = scmp.ne.s32.totalorder %s199, %s213
      %p215 = scmp.eq.s32.totalorder %s32, 0
      %p216 = por %p214, %p215
      %s218 = sadd.s32 %s217, 1
      %p221 = scmp.eq.s32.totalorder %s26, 1
      %p222 = scmp.ne.s32.totalorder %s217, %s219
      %p223 = scmp.eq.s32.totalorder %s26, 0
      %p224 = por %p222, %p223
      %p225 = scmp.ne.s32.totalorder %s217, %s219
      %p226 = scmp.eq.s32.totalorder %s31, 1
      %p227 = por %p225, %p226
      %p228 = scmp.ne.s32.totalorder %s219, %s220
      %p229 = scmp.eq.s32.totalorder %s31, 0
      %p230 = por %p228, %p229
      %p231 = scmp.ne.s32.totalorder %s219, %s220
      %p232 = scmp.eq.s32.totalorder %s32, 1
      %p233 = por %p231, %p232
      %p235 = scmp.ne.s32.totalorder %s220, %s234
      %p236 = scmp.eq.s32.totalorder %s32, 0
      %p237 = por %p235, %p236
      %s239 = sadd.s32 %s238, 1
      %p242 = scmp.eq.s32.totalorder %s26, 1
      %p243 = scmp.ne.s32.totalorder %s238, %s240
      %p244 = scmp.eq.s32.totalorder %s26, 0
      %p245 = por %p243, %p244
      %p246 = scmp.ne.s32.totalorder %s238, %s240
      %p247 = scmp.eq.s32.totalorder %s31, 1
      %p248 = por %p246, %p247
      %p249 = scmp.ne.s32.totalorder %s240, %s241
      %p250 = scmp.eq.s32.totalorder %s31, 0
      %p251 = por %p249, %p250
      %p252 = scmp.ne.s32.totalorder %s240, %s241
      %p253 = scmp.eq.s32.totalorder %s32, 1
      %p254 = por %p252, %p253
      %p256 = scmp.ne.s32.totalorder %s241, %s255
      %p257 = scmp.eq.s32.totalorder %s32, 0
      %p258 = por %p256, %p257
      %s260 = sadd.s32 %s259, 1
      %p263 = scmp.eq.s32.totalorder %s26, 1
      %p264 = scmp.ne.s32.totalorder %s259, %s261
      %p265 = scmp.eq.s32.totalorder %s26, 0
      %p266 = por %p264, %p265
      %p267 = scmp.ne.s32.totalorder %s259, %s261
      %p268 = scmp.eq.s32.totalorder %s31, 1
      %p269 = por %p267, %p268
      %p270 = scmp.ne.s32.totalorder %s261, %s262
      %p271 = scmp.eq.s32.totalorder %s31, 0
      %p272 = por %p270, %p271
      %p273 = scmp.ne.s32.totalorder %s261, %s262
      %p274 = scmp.eq.s32.totalorder %s32, 1
      %p275 = por %p273, %p274
      %p277 = scmp.ne.s32.totalorder %s262, %s276
      %p278 = scmp.eq.s32.totalorder %s32, 0
      %p279 = por %p277, %p278
      %s280 = ssub.s32 %s26, %s33
      %p281 = scmp.eq.s32.totalorder %s280, 0
      %s283 = sadd.s32 %s282, 1
      %s284 = scalar_select %p281, %s282, %s283
      %p287 = pneg %p281
      %p288 = scmp.eq.s32.totalorder %s26, 1
      %p289 = por %p287, %p288
      %p290 = scmp.ne.s32.totalorder %s282, %s285
      %p291 = scmp.eq.s32.totalorder %s26, 0
      %p292 = por %p290, %p291
      %p293 = scmp.ne.s32.totalorder %s282, %s285
      %p294 = scmp.eq.s32.totalorder %s31, 1
      %p295 = por %p293, %p294
      %p296 = scmp.ne.s32.totalorder %s285, %s286
      %p297 = scmp.eq.s32.totalorder %s31, 0
      %p298 = por %p296, %p297
      %p299 = scmp.ne.s32.totalorder %s285, %s286
      %p300 = scmp.eq.s32.totalorder %s32, 1
      %p301 = por %p299, %p300
      %p303 = scmp.ne.s32.totalorder %s286, %s302
      %p304 = scmp.eq.s32.totalorder %s32, 0
      %p305 = por %p303, %p304
      %p306 = scmp.le.s32.totalorder 1, %s26
      %p307 = scmp.lt.s32.totalorder %s26, 3
      %p308 = pnand %p306, %p307
      %p309 = pneg %p308
      // Predicated region
      $region9: #{tpu_custom_call.1} parent=5 // pred_check
        _
      $region10: #{tpu_custom_call.1} parent=5 // pred_check_branch
        %311 = sbr.rel (%p308) target = $region12
      $region11: #{tpu_custom_call.1} parent=5 // pred_region
        %s312 = ssub.s32 %s26, 1
        // Predicated region
        $region13: #{tpu_custom_call.1} parent=11 // pred_check
          %p313 = pneg %p125
        $region14: #{tpu_custom_call.1} parent=11 // pred_check_branch
          %315 = sbr.rel (%p313) target = $region16
        $region15: #{tpu_custom_call.1} parent=11 // pred_region
          _
        $region16: #{tpu_custom_call.1} parent=11 // pred_fallthru
          _
        // Predicated region
        $region17: #{tpu_custom_call.1} parent=11 // pred_check
          %p316 = pneg %p146
        $region18: #{tpu_custom_call.1} parent=11 // pred_check_branch
          %318 = sbr.rel (%p316) target = $region20
        $region19: #{tpu_custom_call.1} parent=11 // pred_region
          _
        $region20: #{tpu_custom_call.1} parent=11 // pred_fallthru
          _
        // Predicated region
        $region21: #{tpu_custom_call.1} parent=11 // pred_check
          %p319 = pneg %p167
        $region22: #{tpu_custom_call.1} parent=11 // pred_check_branch
          %321 = sbr.rel (%p319) target = $region24
        $region23: #{tpu_custom_call.1} parent=11 // pred_region
          _
        $region24: #{tpu_custom_call.1} parent=11 // pred_fallthru
          _
        // Predicated region
        $region25: #{tpu_custom_call.1} parent=11 // pred_check
          %p322 = pneg %p188
        $region26: #{tpu_custom_call.1} parent=11 // pred_check_branch
          %324 = sbr.rel (%p322) target = $region28
        $region27: #{tpu_custom_call.1} parent=11 // pred_region
          _
        $region28: #{tpu_custom_call.1} parent=11 // pred_fallthru
          _
        // Predicated region
        $region29: #{tpu_custom_call.1} parent=11 // pred_check
          %p325 = pneg %p209
        $region30: #{tpu_custom_call.1} parent=11 // pred_check_branch
          %327 = sbr.rel (%p325) target = $region32
        $region31: #{tpu_custom_call.1} parent=11 // pred_region
          _
        $region32: #{tpu_custom_call.1} parent=11 // pred_fallthru
          _
        // Predicated region
        $region33: #{tpu_custom_call.1} parent=11 // pred_check
          %p328 = pneg %p230
        $region34: #{tpu_custom_call.1} parent=11 // pred_check_branch
          %330 = sbr.rel (%p328) target = $region36
        $region35: #{tpu_custom_call.1} parent=11 // pred_region
          _
        $region36: #{tpu_custom_call.1} parent=11 // pred_fallthru
          _
        // Predicated region
        $region37: #{tpu_custom_call.1} parent=11 // pred_check
          %p331 = pneg %p251
        $region38: #{tpu_custom_call.1} parent=11 // pred_check_branch
          %333 = sbr.rel (%p331) target = $region40
        $region39: #{tpu_custom_call.1} parent=11 // pred_region
          _
        $region40: #{tpu_custom_call.1} parent=11 // pred_fallthru
          _
        // Predicated region
        $region41: #{tpu_custom_call.1} parent=11 // pred_check
          %p334 = pneg %p272
        $region42: #{tpu_custom_call.1} parent=11 // pred_check_branch
          %336 = sbr.rel (%p334) target = $region44
        $region43: #{tpu_custom_call.1} parent=11 // pred_region
          _
        $region44: #{tpu_custom_call.1} parent=11 // pred_fallthru
          _
      $region12: #{tpu_custom_call.1} parent=5 // pred_fallthru
        _
      %p337 = scmp.lt.s32.totalorder %s26, 2
      // Predicated region
      $region45: #{tpu_custom_call.1} parent=5 // pred_check
        %p338 = pneg %p337
      $region46: #{tpu_custom_call.1} parent=5 // pred_check_branch
        %340 = sbr.rel (%p338) target = $region48
      $region47: #{tpu_custom_call.1} parent=5 // pred_region
        // Predicated region
        $region49: #{tpu_custom_call.1} parent=47 // pred_check
          %p341 = pneg %p46
        $region50: #{tpu_custom_call.1} parent=47 // pred_check_branch
          %343 = sbr.rel (%p341) target = $region52
        $region51: #{tpu_custom_call.1} parent=47 // pred_region
          %s344 = sand.u32 %s36, 1
          %s345 = scalar_lea.sflag [#allocation3], %s344
          %s346 = sand.u32 %s36, 1
          %s347 = smul.addr %s346, 8
          %s348 = scalar_lea.vmem [#allocation2], %s347
          %350 = vsyncadd %s345, 0
          %s351 = smul.addr %s26, 8
          %s352 = scalar_lea.hbm %s0, %s351
          %s354 = sshll.u32 %s352, 4
          %s355 = int_to_ptr.hbm [resolvable:$true] %s354
          %s356 = sshll.u32 %s348, 4
          %s357 = int_to_ptr.vmem [resolvable:$true] %s356
          %359 = dma.hbm_to_vmem [thread:$0]  %s355, 128, %s357, %s345
        $region52: #{tpu_custom_call.1} parent=47 // pred_fallthru
          _
        // Predicated region
        $region53: #{tpu_custom_call.1} parent=47 // pred_check
          %p360 = pneg %p72
        $region54: #{tpu_custom_call.1} parent=47 // pred_check_branch
          %362 = sbr.rel (%p360) target = $region56
        $region55: #{tpu_custom_call.1} parent=47 // pred_region
          %s363 = sand.u32 %s26, 1
          %s364 = scalar_lea.sflag [#allocation6], %s363
          %s365 = sand.u32 %s62, 1
          %s366 = smul.addr %s365, 8
          %s367 = scalar_lea.vmem [#allocation5], %s366
          %369 = vsyncadd %s364, 0
          %s370 = smul.addr %s26, 8
          %s371 = scalar_lea.hbm %s1, %s370
          %s373 = sshll.u32 %s371, 4
          %s374 = int_to_ptr.hbm [resolvable:$true] %s373
          %s375 = sshll.u32 %s367, 4
          %s376 = int_to_ptr.vmem [resolvable:$true] %s375
          %378 = dma.hbm_to_vmem [thread:$0]  %s374, 128, %s376, %s364
        $region56: #{tpu_custom_call.1} parent=47 // pred_fallthru
          _
        // Predicated region
        $region57: #{tpu_custom_call.1} parent=47 // pred_check
          %p379 = pneg %p98
        $region58: #{tpu_custom_call.1} parent=47 // pred_check_branch
          %381 = sbr.rel (%p379) target = $region60
        $region59: #{tpu_custom_call.1} parent=47 // pred_region
          %s382 = sand.u32 %s26, 1
          %s383 = scalar_lea.sflag [#allocation6], %s382
          %s384 = sand.u32 %s88, 1
          %s385 = smul.addr %s384, 8
          %s386 = scalar_lea.vmem [#allocation7], %s385
          %388 = vsyncadd %s383, 0
          %s389 = smul.addr %s26, 8
          %s390 = scalar_lea.hbm %s2, %s389
          %s392 = sshll.u32 %s390, 4
          %s393 = int_to_ptr.hbm [resolvable:$true] %s392
          %s394 = sshll.u32 %s386, 4
          %s395 = int_to_ptr.vmem [resolvable:$true] %s394
          %397 = dma.hbm_to_vmem [thread:$0]  %s393, 128, %s395, %s383
        $region60: #{tpu_custom_call.1} parent=47 // pred_fallthru
          _
      $region48: #{tpu_custom_call.1} parent=5 // pred_fallthru
        _
      %p398 = scmp.le.s32.totalorder 1, %s26
      %p399 = scmp.lt.s32.totalorder %s26, 3
      %p400 = pnand %p398, %p399
      %p401 = pneg %p400
      // Predicated region
      $region61: #{tpu_custom_call.1} parent=5 // pred_check
        _
      $region62: #{tpu_custom_call.1} parent=5 // pred_check_branch
        %403 = sbr.rel (%p400) target = $region64
      $region63: #{tpu_custom_call.1} parent=5 // pred_region
        %s404 = ssub.s32 %s26, 1
        %s405 = sand.u32 %s39, 1
        %s406 = scalar_lea.sflag [#allocation3], %s405
        %s407 = sand.u32 %s39, 1
        %s408 = smul.addr %s407, 8
        %s409 = scalar_lea.vmem [#allocation2], %s408
        // Predicated region
        $region65: #{tpu_custom_call.1} parent=63 // pred_check
          %p410 = pneg %p52
        $region66: #{tpu_custom_call.1} parent=63 // pred_check_branch
          %412 = sbr.rel (%p410) target = $region68
        $region67: #{tpu_custom_call.1} parent=63 // pred_region
          %414 = dma.done %s406, 128
        $region68: #{tpu_custom_call.1} parent=63 // pred_fallthru
          _
        %s415 = sand.u32 %s31, 1
        %s416 = scalar_lea.sflag [#allocation6], %s415
        %s417 = sand.u32 %s65, 1
        %s418 = smul.addr %s417, 8
        %s419 = scalar_lea.vmem [#allocation5], %s418
        // Predicated region
        $region69: #{tpu_custom_call.1} parent=63 // pred_check
          %p420 = pneg %p78
        $region70: #{tpu_custom_call.1} parent=63 // pred_check_branch
          %422 = sbr.rel (%p420) target = $region72
        $region71: #{tpu_custom_call.1} parent=63 // pred_region
          %424 = dma.done %s416, 128
        $region72: #{tpu_custom_call.1} parent=63 // pred_fallthru
          _
        %s425 = sand.u32 %s31, 1
        %s426 = scalar_lea.sflag [#allocation6], %s425
        %s427 = sand.u32 %s91, 1
        %s428 = smul.addr %s427, 8
        %s429 = scalar_lea.vmem [#allocation7], %s428
        // Predicated region
        $region73: #{tpu_custom_call.1} parent=63 // pred_check
          %p430 = pneg %p104
        $region74: #{tpu_custom_call.1} parent=63 // pred_check_branch
          %432 = sbr.rel (%p430) target = $region76
        $region75: #{tpu_custom_call.1} parent=63 // pred_region
          %434 = dma.done %s426, 128
        $region76: #{tpu_custom_call.1} parent=63 // pred_fallthru
          _
        %s435 = sand.u32 %s39, 1
        %s436 = scalar_lea.sflag [#allocation3], %s435
        %s437 = sand.u32 %s39, 1
        %s438 = smul.addr %s437, 8
        %s439 = scalar_lea.vmem [#allocation2], %s438
        %p440 = pneg %p52
        %p441 = pneg %p49
        %s442 = sand.u32 %s31, 1
        %s443 = scalar_lea.sflag [#allocation6], %s442
        %s444 = sand.u32 %s65, 1
        %s445 = smul.addr %s444, 8
        %s446 = scalar_lea.vmem [#allocation5], %s445
        %p447 = pneg %p78
        %p448 = pneg %p75
        %s449 = sand.u32 %s31, 1
        %s450 = scalar_lea.sflag [#allocation6], %s449
        %s451 = sand.u32 %s91, 1
        %s452 = smul.addr %s451, 8
        %s453 = scalar_lea.vmem [#allocation7], %s452
        %p454 = pneg %p104
        %p455 = pneg %p101
        %p456 = pneg %p125
        %p457 = pneg %p122
        %p458 = pneg %p146
        %p459 = pneg %p143
        %p460 = pneg %p167
        %p461 = pneg %p164
        %p462 = pneg %p188
        %p463 = pneg %p185
        %p464 = pneg %p209
        %p465 = pneg %p206
        %p466 = pneg %p230
        %p467 = pneg %p227
        %p468 = pneg %p251
        %p469 = pneg %p248
        %p470 = pneg %p272
        %p471 = pneg %p269
        %p472 = pneg %p298
        %p473 = pneg %p295
        %s474 = sand.u32 %s285, 1
        %s475 = scalar_lea.sflag [#allocation4], %s474
        %s476 = sand.u32 %s285, 1
        %s477 = smul.addr %s476, 8
        %s478 = scalar_lea.vmem [#allocation8], %s477
        %v479 = vld [vmem:[%s409] sm:$0xff]
        %v480 = vld [vmem:[%s419] sm:$0xff]
        %v481 = vld [vmem:[%s429] sm:$0xff]
        %v482 = vld [vmem:[%s3] sm:$0xff]
        %v483 = vld [vmem:[%s3 + $0x8] sm:$0xff]
        %v484 = vld [vmem:[%s3 + $0x10] sm:$0xff]
        %v485 = vld [vmem:[%s3 + $0x18] sm:$0xff]
        %v486 = vld [vmem:[%s4] sm:$0x1]
        %v488 = vperm.slane %v486, 0
        %vm490 = vcmask 261120
        %v492 = vsel %vm490, %v479, 0
        %494 = vmatpush.msra.mxu0 0.0
        %495 = vmatpush.msra.mxu0 0.0
        %496 = vmatpush.msra.mxu0 0.0
        %497 = vmatpush.msra.mxu0 0.0
        %498 = vmatpush.msra.mxu0 0.0
        %499 = vmatpush.msra.mxu0 0.0
        %500 = vmatpush.msra.mxu0 0.0
        %501 = vmatpush.msra.mxu0 0.0
        %502 = vmatpush.msra.mxu0 0.0
        %503 = vmatpush.msra.mxu0 0.0
        %504 = vmatpush.msra.mxu0 0.0
        %505 = vmatpush.msra.mxu0 0.0
        %506 = vmatpush.msra.mxu0 %v485
        %507 = vmatpush.msra.mxu0 %v484
        %508 = vmatpush.msra.mxu0 %v483
        %509 = vmatpush.msra.mxu0 %v482
        %510 = vmatmul.f32.gmra.mxu0 %v492
        %v511 = vpop.f32.mrf.mxu0
        %v512 = vadd.f32 %v488, %v511
        %513 = vdwg.mxu0
        %v514 = vmul.f32 %v512, 0.25
        %v515 = vld [vmem:[%s5] sm:$0xff]
        %v516 = vld [vmem:[%s5 + $0x8] sm:$0xff]
        %v517 = vld [vmem:[%s5 + $0x10] sm:$0xff]
        %v518 = vld [vmem:[%s5 + $0x18] sm:$0xff]
        %v519 = vld [vmem:[%s6] sm:$0x1]
        %v521 = vperm.slane %v519, 0
        %v524 = vsel %vm490, %v480, 0
        %526 = vmatpush.msra.mxu0 0.0
        %527 = vmatpush.msra.mxu0 0.0
        %528 = vmatpush.msra.mxu0 0.0
        %529 = vmatpush.msra.mxu0 0.0
        %530 = vmatpush.msra.mxu0 0.0
        %531 = vmatpush.msra.mxu0 0.0
        %532 = vmatpush.msra.mxu0 0.0
        %533 = vmatpush.msra.mxu0 0.0
        %534 = vmatpush.msra.mxu0 0.0
        %535 = vmatpush.msra.mxu0 0.0
        %536 = vmatpush.msra.mxu0 0.0
        %537 = vmatpush.msra.mxu0 0.0
        %538 = vmatpush.msra.mxu0 %v518
        %539 = vmatpush.msra.mxu0 %v517
        %540 = vmatpush.msra.mxu0 %v516
        %541 = vmatpush.msra.mxu0 %v515
        %542 = vmatmul.f32.gmra.mxu0 %v524
        %v543 = vpop.f32.mrf.mxu0
        %v544 = vadd.f32 %v521, %v543
        %545 = vdwg.mxu0
        %v546 = vld [vmem:[%s7] sm:$0xff]
        %v547 = vld [vmem:[%s7 + $0x8] sm:$0xff]
        %v548 = vld [vmem:[%s7 + $0x10] sm:$0xff]
        %v549 = vld [vmem:[%s7 + $0x18] sm:$0xff]
        %v550 = vld [vmem:[%s8] sm:$0x1]
        %v552 = vperm.slane %v550, 0
        %v555 = vsel %vm490, %v481, 0
        %557 = vmatpush.msra.mxu0 0.0
        %558 = vmatpush.msra.mxu0 0.0
        %559 = vmatpush.msra.mxu0 0.0
        %560 = vmatpush.msra.mxu0 0.0
        %561 = vmatpush.msra.mxu0 0.0
        %562 = vmatpush.msra.mxu0 0.0
        %563 = vmatpush.msra.mxu0 0.0
        %564 = vmatpush.msra.mxu0 0.0
        %565 = vmatpush.msra.mxu0 0.0
        %566 = vmatpush.msra.mxu0 0.0
        %567 = vmatpush.msra.mxu0 0.0
        %568 = vmatpush.msra.mxu0 0.0
        %569 = vmatpush.msra.mxu0 %v549
        %570 = vmatpush.msra.mxu0 %v548
        %571 = vmatpush.msra.mxu0 %v547
        %572 = vmatpush.msra.mxu0 %v546
        %573 = vmatmul.f32.gmra.mxu0 %v555
        %v574 = vpop.f32.mrf.mxu0
        %v575 = vadd.f32 %v552, %v574
        %576 = vdwg.mxu0
        %v577 = vld [vmem:[%s10] sm:$0x1]
        %vm578 = vcmask 130048
        %v580 = vsel %vm578, %v514, 0
        %v583 = vsel %vm578, %v544, 0
        %585 = vmatpush.xpose.msra.mxu0 0.0
        %586 = vmatpush.xpose.msra.mxu0 0.0
        %587 = vmatpush.xpose.msra.mxu0 0.0
        %588 = vmatpush.xpose.msra.mxu0 0.0
        %589 = vmatpush.xpose.msra.mxu0 0.0
        %590 = vmatpush.xpose.msra.mxu0 0.0
        %591 = vmatpush.xpose.msra.mxu0 0.0
        %592 = vmatpush.xpose.msra.mxu0 0.0
        %593 = vmatpush.xpose.msra.mxu0 0.0
        %594 = vmatpush.xpose.msra.mxu0 0.0
        %595 = vmatpush.xpose.msra.mxu0 0.0
        %596 = vmatpush.xpose.msra.mxu0 0.0
        %597 = vmatpush.xpose.msra.mxu0 0.0
        %598 = vmatpush.xpose.msra.mxu0 0.0
        %599 = vmatpush.xpose.msra.mxu0 0.0
        %600 = vmatpush.xpose.msra.mxu0 %v583
        %601 = vmatmul.f32.gmra.mxu0 %v580
        %v602 = vpop.f32.mrf.mxu0
        %v603 = vadd.f32 0.0, %v602
        %604 = vdwg.mxu0
        %vm605 = vcmask 64512
        %v606 = vsel %vm605, %v603, -inf
        %607 = vmax.xlane.f32.xlu0 %v606
        %v608 = vpop.xlane.xlu0 %607
        %v609 = vsub.f32 %v603, %v608
        %v610 = vmul.f32 %v609, 1.442695
        %v611 = vpow.pop %v610
        %v612 = vsel %vm605, %v611, 0.0
        %613 = vadd.xlane.f32.xlu0 %v612
        %v614 = vpop.xlane.xlu0 %613
        %v615 = vrcp.pop %v614
        %v616 = vmul.f32 %v614, %v615
        %v617 = vsub.f32 1.0, %v616
        %v618 = vmul.f32 %v615, %v617
        %v619 = vadd.f32 %v615, %v618
        %vm620 = vweird.f32 %v614
        %vm621 = vweird.f32 %v615
        %vm622 = vmor %vm620, %vm621
        %v623 = vsel %vm622, %v615, %v619
        %v624 = vand.u32 2147483647, %v614
        %vm625 = vcmp.eq.f32.partialorder %v624, 8.507059e+37
        %v626 = vand.u32 %v614, 2147483648
        %v627 = vor.u32 1.1754944e-38, %v626
        %v628 = vsel %vm625, %v627, %v623
        %v629 = vmul.f32 %v611, %v628
        %v631 = vsel %vm605, %v629, 0
        %633 = vmatpush.msra.mxu0 0.0
        %634 = vmatpush.msra.mxu0 0.0
        %635 = vmatpush.msra.mxu0 0.0
        %636 = vmatpush.msra.mxu0 0.0
        %637 = vmatpush.msra.mxu0 0.0
        %638 = vmatpush.msra.mxu0 0.0
        %639 = vmatpush.msra.mxu0 0.0
        %640 = vmatpush.msra.mxu0 0.0
        %641 = vmatpush.msra.mxu0 0.0
        %642 = vmatpush.msra.mxu0 0.0
        %643 = vmatpush.msra.mxu0 0.0
        %644 = vmatpush.msra.mxu0 0.0
        %645 = vmatpush.msra.mxu0 0.0
        %646 = vmatpush.msra.mxu0 0.0
        %647 = vmatpush.msra.mxu0 0.0
        %648 = vmatpush.msra.mxu0 %v575
        %649 = vmatmul.f32.gmra.mxu0 %v631
        %v650 = vpop.f32.mrf.mxu0
        %v651 = vadd.f32 0.0, %v650
        %652 = vdwg.mxu0
        %v653 = vld [vmem:[%s9] sm:$0xff]
        %v654 = vld [vmem:[%s9 + $0x8] sm:$0xff]
        %v656 = vsel %vm578, %v651, 0
        %658 = vmatpush.msra.mxu0 0.0
        %659 = vmatpush.msra.mxu0 0.0
        %660 = vmatpush.msra.mxu0 0.0
        %661 = vmatpush.msra.mxu0 0.0
        %662 = vmatpush.msra.mxu0 0.0
        %663 = vmatpush.msra.mxu0 0.0
        %664 = vmatpush.msra.mxu0 0.0
        %665 = vmatpush.msra.mxu0 0.0
        %666 = vmatpush.msra.mxu0 0.0
        %667 = vmatpush.msra.mxu0 0.0
        %668 = vmatpush.msra.mxu0 0.0
        %669 = vmatpush.msra.mxu0 0.0
        %670 = vmatpush.msra.mxu0 0.0
        %671 = vmatpush.msra.mxu0 0.0
        %672 = vmatpush.msra.mxu0 %v654
        %673 = vmatpush.msra.mxu0 %v653
        %674 = vmatmul.f32.gmra.mxu0 %v656
        %v675 = vpop.f32.mrf.mxu0
        %v676 = vadd.f32 0.0, %v675
        %677 = vdwg.mxu0
        %v679 = vperm.slane %v577, 0
        %v681 = vadd.f32 %v679, %v676
        %682 = vrot.lane.b32.xlu0 %v514, 112
        %v683 = vpop.permute.xlu0 %682
        %684 = vrot.lane.b32.xlu0 %v544, 112
        %v685 = vpop.permute.xlu0 %684
        %v686 = vsel %vm578, %v683, 0
        %v688 = vsel %vm578, %v685, 0
        %690 = vmatpush.xpose.msra.mxu0 0.0
        %691 = vmatpush.xpose.msra.mxu0 0.0
        %692 = vmatpush.xpose.msra.mxu0 0.0
        %693 = vmatpush.xpose.msra.mxu0 0.0
        %694 = vmatpush.xpose.msra.mxu0 0.0
        %695 = vmatpush.xpose.msra.mxu0 0.0
        %696 = vmatpush.xpose.msra.mxu0 0.0
        %697 = vmatpush.xpose.msra.mxu0 0.0
        %698 = vmatpush.xpose.msra.mxu0 0.0
        %699 = vmatpush.xpose.msra.mxu0 0.0
        %700 = vmatpush.xpose.msra.mxu0 0.0
        %701 = vmatpush.xpose.msra.mxu0 0.0
        %702 = vmatpush.xpose.msra.mxu0 0.0
        %703 = vmatpush.xpose.msra.mxu0 0.0
        %704 = vmatpush.xpose.msra.mxu0 0.0
        %705 = vmatpush.xpose.msra.mxu0 %v688
        %706 = vmatmul.f32.gmra.mxu0 %v686
        %v707 = vpop.f32.mrf.mxu0
        %v708 = vadd.f32 0.0, %v707
        %709 = vdwg.mxu0
        %v710 = vsel %vm605, %v708, -inf
        %711 = vmax.xlane.f32.xlu0 %v710
        %v712 = vpop.xlane.xlu0 %711
        %v713 = vsub.f32 %v708, %v712
        %v714 = vmul.f32 %v713, 1.442695
        %v715 = vpow.pop %v714
        %v716 = vsel %vm605, %v715, 0.0
        %717 = vadd.xlane.f32.xlu0 %v716
        %v718 = vpop.xlane.xlu0 %717
        %v719 = vrcp.pop %v718
        %v720 = vmul.f32 %v718, %v719
        %v721 = vsub.f32 1.0, %v720
        %v722 = vmul.f32 %v719, %v721
        %v723 = vadd.f32 %v719, %v722
        %vm724 = vweird.f32 %v718
        %vm725 = vweird.f32 %v719
        %vm726 = vmor %vm724, %vm725
        %v727 = vsel %vm726, %v719, %v723
        %v728 = vand.u32 2147483647, %v718
        %vm729 = vcmp.eq.f32.partialorder %v728, 8.507059e+37
        %v730 = vand.u32 %v718, 2147483648
        %v731 = vor.u32 1.1754944e-38, %v730
        %v732 = vsel %vm729, %v731, %v727
        %v733 = vmul.f32 %v715, %v732
        %735 = vrot.lane.b32.xlu0 %v575, 112
        %v736 = vpop.permute.xlu0 %735
        %v739 = vsel %vm605, %v733, 0
        %741 = vmatpush.msra.mxu0 0.0
        %742 = vmatpush.msra.mxu0 0.0
        %743 = vmatpush.msra.mxu0 0.0
        %744 = vmatpush.msra.mxu0 0.0
        %745 = vmatpush.msra.mxu0 0.0
        %746 = vmatpush.msra.mxu0 0.0
        %747 = vmatpush.msra.mxu0 0.0
        %748 = vmatpush.msra.mxu0 0.0
        %749 = vmatpush.msra.mxu0 0.0
        %750 = vmatpush.msra.mxu0 0.0
        %751 = vmatpush.msra.mxu0 0.0
        %752 = vmatpush.msra.mxu0 0.0
        %753 = vmatpush.msra.mxu0 0.0
        %754 = vmatpush.msra.mxu0 0.0
        %755 = vmatpush.msra.mxu0 0.0
        %756 = vmatpush.msra.mxu0 %v736
        %757 = vmatmul.f32.gmra.mxu0 %v739
        %v758 = vpop.f32.mrf.mxu0
        %v759 = vadd.f32 0.0, %v758
        %760 = vdwg.mxu0
        %v761 = vld [vmem:[%s9 + $0x10] sm:$0xff]
        %v762 = vld [vmem:[%s9 + $0x18] sm:$0xff]
        %v764 = vsel %vm578, %v759, 0
        %766 = vmatpush.msra.mxu0 0.0
        %767 = vmatpush.msra.mxu0 0.0
        %768 = vmatpush.msra.mxu0 0.0
        %769 = vmatpush.msra.mxu0 0.0
        %770 = vmatpush.msra.mxu0 0.0
        %771 = vmatpush.msra.mxu0 0.0
        %772 = vmatpush.msra.mxu0 0.0
        %773 = vmatpush.msra.mxu0 0.0
        %774 = vmatpush.msra.mxu0 0.0
        %775 = vmatpush.msra.mxu0 0.0
        %776 = vmatpush.msra.mxu0 0.0
        %777 = vmatpush.msra.mxu0 0.0
        %778 = vmatpush.msra.mxu0 0.0
        %779 = vmatpush.msra.mxu0 0.0
        %780 = vmatpush.msra.mxu0 %v762
        %781 = vmatpush.msra.mxu0 %v761
        %782 = vmatmul.f32.gmra.mxu0 %v764
        %v783 = vpop.f32.mrf.mxu0
        %v784 = vadd.f32 0.0, %v783
        %785 = vdwg.mxu0
        %v786 = vadd.f32 %v681, %v784
        %787 = vrot.lane.b32.xlu0 %v514, 96
        %v788 = vpop.permute.xlu0 %787
        %789 = vrot.lane.b32.xlu0 %v544, 96
        %v790 = vpop.permute.xlu0 %789
        %v791 = vsel %vm578, %v788, 0
        %v793 = vsel %vm578, %v790, 0
        %795 = vmatpush.xpose.msra.mxu0 0.0
        %796 = vmatpush.xpose.msra.mxu0 0.0
        %797 = vmatpush.xpose.msra.mxu0 0.0
        %798 = vmatpush.xpose.msra.mxu0 0.0
        %799 = vmatpush.xpose.msra.mxu0 0.0
        %800 = vmatpush.xpose.msra.mxu0 0.0
        %801 = vmatpush.xpose.msra.mxu0 0.0
        %802 = vmatpush.xpose.msra.mxu0 0.0
        %803 = vmatpush.xpose.msra.mxu0 0.0
        %804 = vmatpush.xpose.msra.mxu0 0.0
        %805 = vmatpush.xpose.msra.mxu0 0.0
        %806 = vmatpush.xpose.msra.mxu0 0.0
        %807 = vmatpush.xpose.msra.mxu0 0.0
        %808 = vmatpush.xpose.msra.mxu0 0.0
        %809 = vmatpush.xpose.msra.mxu0 0.0
        %810 = vmatpush.xpose.msra.mxu0 %v793
        %811 = vmatmul.f32.gmra.mxu0 %v791
        %v812 = vpop.f32.mrf.mxu0
        %v813 = vadd.f32 0.0, %v812
        %814 = vdwg.mxu0
        %v815 = vsel %vm605, %v813, -inf
        %816 = vmax.xlane.f32.xlu0 %v815
        %v817 = vpop.xlane.xlu0 %816
        %v818 = vsub.f32 %v813, %v817
        %v819 = vmul.f32 %v818, 1.442695
        %v820 = vpow.pop %v819
        %v821 = vsel %vm605, %v820, 0.0
        %822 = vadd.xlane.f32.xlu0 %v821
        %v823 = vpop.xlane.xlu0 %822
        %v824 = vrcp.pop %v823
        %v825 = vmul.f32 %v823, %v824
        %v826 = vsub.f32 1.0, %v825
        %v827 = vmul.f32 %v824, %v826
        %v828 = vadd.f32 %v824, %v827
        %vm829 = vweird.f32 %v823
        %vm830 = vweird.f32 %v824
        %vm831 = vmor %vm829, %vm830
        %v832 = vsel %vm831, %v824, %v828
        %v833 = vand.u32 2147483647, %v823
        %vm834 = vcmp.eq.f32.partialorder %v833, 8.507059e+37
        %v835 = vand.u32 %v823, 2147483648
        %v836 = vor.u32 1.1754944e-38, %v835
        %v837 = vsel %vm834, %v836, %v832
        %v838 = vmul.f32 %v820, %v837
        %839 = vrot.lane.b32.xlu0 %v575, 96
        %v840 = vpop.permute.xlu0 %839
        %v843 = vsel %vm605, %v838, 0
        %845 = vmatpush.msra.mxu0 0.0
        %846 = vmatpush.msra.mxu0 0.0
        %847 = vmatpush.msra.mxu0 0.0
        %848 = vmatpush.msra.mxu0 0.0
        %849 = vmatpush.msra.mxu0 0.0
        %850 = vmatpush.msra.mxu0 0.0
        %851 = vmatpush.msra.mxu0 0.0
        %852 = vmatpush.msra.mxu0 0.0
        %853 = vmatpush.msra.mxu0 0.0
        %854 = vmatpush.msra.mxu0 0.0
        %855 = vmatpush.msra.mxu0 0.0
        %856 = vmatpush.msra.mxu0 0.0
        %857 = vmatpush.msra.mxu0 0.0
        %858 = vmatpush.msra.mxu0 0.0
        %859 = vmatpush.msra.mxu0 0.0
        %860 = vmatpush.msra.mxu0 %v840
        %861 = vmatmul.f32.gmra.mxu0 %v843
        %v862 = vpop.f32.mrf.mxu0
        %v863 = vadd.f32 0.0, %v862
        %864 = vdwg.mxu0
        %v865 = vld [vmem:[%s9 + $0x20] sm:$0xff]
        %v866 = vld [vmem:[%s9 + $0x28] sm:$0xff]
        %v868 = vsel %vm578, %v863, 0
        %870 = vmatpush.msra.mxu0 0.0
        %871 = vmatpush.msra.mxu0 0.0
        %872 = vmatpush.msra.mxu0 0.0
        %873 = vmatpush.msra.mxu0 0.0
        %874 = vmatpush.msra.mxu0 0.0
        %875 = vmatpush.msra.mxu0 0.0
        %876 = vmatpush.msra.mxu0 0.0
        %877 = vmatpush.msra.mxu0 0.0
        %878 = vmatpush.msra.mxu0 0.0
        %879 = vmatpush.msra.mxu0 0.0
        %880 = vmatpush.msra.mxu0 0.0
        %881 = vmatpush.msra.mxu0 0.0
        %882 = vmatpush.msra.mxu0 0.0
        %883 = vmatpush.msra.mxu0 0.0
        %884 = vmatpush.msra.mxu0 %v866
        %885 = vmatpush.msra.mxu0 %v865
        %886 = vmatmul.f32.gmra.mxu0 %v868
        %v887 = vpop.f32.mrf.mxu0
        %v888 = vadd.f32 0.0, %v887
        %889 = vdwg.mxu0
        %v890 = vadd.f32 %v786, %v888
        %891 = vrot.lane.b32.xlu0 %v514, 80
        %v892 = vpop.permute.xlu0 %891
        %893 = vrot.lane.b32.xlu0 %v544, 80
        %v894 = vpop.permute.xlu0 %893
        %v895 = vsel %vm578, %v892, 0
        %v897 = vsel %vm578, %v894, 0
        %899 = vmatpush.xpose.msra.mxu0 0.0
        %900 = vmatpush.xpose.msra.mxu0 0.0
        %901 = vmatpush.xpose.msra.mxu0 0.0
        %902 = vmatpush.xpose.msra.mxu0 0.0
        %903 = vmatpush.xpose.msra.mxu0 0.0
        %904 = vmatpush.xpose.msra.mxu0 0.0
        %905 = vmatpush.xpose.msra.mxu0 0.0
        %906 = vmatpush.xpose.msra.mxu0 0.0
        %907 = vmatpush.xpose.msra.mxu0 0.0
        %908 = vmatpush.xpose.msra.mxu0 0.0
        %909 = vmatpush.xpose.msra.mxu0 0.0
        %910 = vmatpush.xpose.msra.mxu0 0.0
        %911 = vmatpush.xpose.msra.mxu0 0.0
        %912 = vmatpush.xpose.msra.mxu0 0.0
        %913 = vmatpush.xpose.msra.mxu0 0.0
        %914 = vmatpush.xpose.msra.mxu0 %v897
        %915 = vmatmul.f32.gmra.mxu0 %v895
        %v916 = vpop.f32.mrf.mxu0
        %v917 = vadd.f32 0.0, %v916
        %918 = vdwg.mxu0
        %v919 = vsel %vm605, %v917, -inf
        %920 = vmax.xlane.f32.xlu0 %v919
        %v921 = vpop.xlane.xlu0 %920
        %v922 = vsub.f32 %v917, %v921
        %v923 = vmul.f32 %v922, 1.442695
        %v924 = vpow.pop %v923
        %v925 = vsel %vm605, %v924, 0.0
        %926 = vadd.xlane.f32.xlu0 %v925
        %v927 = vpop.xlane.xlu0 %926
        %v928 = vrcp.pop %v927
        %v929 = vmul.f32 %v927, %v928
        %v930 = vsub.f32 1.0, %v929
        %v931 = vmul.f32 %v928, %v930
        %v932 = vadd.f32 %v928, %v931
        %vm933 = vweird.f32 %v927
        %vm934 = vweird.f32 %v928
        %vm935 = vmor %vm933, %vm934
        %v936 = vsel %vm935, %v928, %v932
        %v937 = vand.u32 2147483647, %v927
        %vm938 = vcmp.eq.f32.partialorder %v937, 8.507059e+37
        %v939 = vand.u32 %v927, 2147483648
        %v940 = vor.u32 1.1754944e-38, %v939
        %v941 = vsel %vm938, %v940, %v936
        %v942 = vmul.f32 %v924, %v941
        %943 = vrot.lane.b32.xlu0 %v575, 80
        %v944 = vpop.permute.xlu0 %943
        %v947 = vsel %vm605, %v942, 0
        %949 = vmatpush.msra.mxu0 0.0
        %950 = vmatpush.msra.mxu0 0.0
        %951 = vmatpush.msra.mxu0 0.0
        %952 = vmatpush.msra.mxu0 0.0
        %953 = vmatpush.msra.mxu0 0.0
        %954 = vmatpush.msra.mxu0 0.0
        %955 = vmatpush.msra.mxu0 0.0
        %956 = vmatpush.msra.mxu0 0.0
        %957 = vmatpush.msra.mxu0 0.0
        %958 = vmatpush.msra.mxu0 0.0
        %959 = vmatpush.msra.mxu0 0.0
        %960 = vmatpush.msra.mxu0 0.0
        %961 = vmatpush.msra.mxu0 0.0
        %962 = vmatpush.msra.mxu0 0.0
        %963 = vmatpush.msra.mxu0 0.0
        %964 = vmatpush.msra.mxu0 %v944
        %965 = vmatmul.f32.gmra.mxu0 %v947
        %v966 = vpop.f32.mrf.mxu0
        %v967 = vadd.f32 0.0, %v966
        %968 = vdwg.mxu0
        %v969 = vld [vmem:[%s9 + $0x30] sm:$0xff]
        %v970 = vld [vmem:[%s9 + $0x38] sm:$0xff]
        %v972 = vsel %vm578, %v967, 0
        %974 = vmatpush.msra.mxu0 0.0
        %975 = vmatpush.msra.mxu0 0.0
        %976 = vmatpush.msra.mxu0 0.0
        %977 = vmatpush.msra.mxu0 0.0
        %978 = vmatpush.msra.mxu0 0.0
        %979 = vmatpush.msra.mxu0 0.0
        %980 = vmatpush.msra.mxu0 0.0
        %981 = vmatpush.msra.mxu0 0.0
        %982 = vmatpush.msra.mxu0 0.0
        %983 = vmatpush.msra.mxu0 0.0
        %984 = vmatpush.msra.mxu0 0.0
        %985 = vmatpush.msra.mxu0 0.0
        %986 = vmatpush.msra.mxu0 0.0
        %987 = vmatpush.msra.mxu0 0.0
        %988 = vmatpush.msra.mxu0 %v970
        %989 = vmatpush.msra.mxu0 %v969
        %990 = vmatmul.f32.gmra.mxu0 %v972
        %v991 = vpop.f32.mrf.mxu0
        %v992 = vadd.f32 0.0, %v991
        %993 = vdwg.mxu0
        %v994 = vadd.f32 %v890, %v992
        %995 = vst.msk [vmem:[%s478] sm:$0xff] %vm490, %v994
        %s996 = sand.u32 %s285, 1
        %s997 = scalar_lea.sflag [#allocation4], %s996
        %s998 = sand.u32 %s285, 1
        %s999 = smul.addr %s998, 8
        %s1000 = scalar_lea.vmem [#allocation8], %s999
        // Predicated region
        $region77: #{tpu_custom_call.1} parent=63 // pred_check
          %p1001 = pneg %p295
        $region78: #{tpu_custom_call.1} parent=63 // pred_check_branch
          %1003 = sbr.rel (%p1001) target = $region80
        $region79: #{tpu_custom_call.1} parent=63 // pred_region
          %1005 = vsyncadd %s997, 0
          %s1006 = smul.addr %s31, 8
          %s1007 = scalar_lea.hbm %s11, %s1006
          %s1009 = sshll.u32 %s1000, 4
          %s1010 = int_to_ptr.vmem [resolvable:$true] %s1009
          %s1011 = sshll.u32 %s1007, 4
          %s1012 = int_to_ptr.hbm [resolvable:$true] %s1011
          %1014 = dma.vmem_to_hbm [thread:$0]  %s1010, 128, %s1012, %s997
        $region80: #{tpu_custom_call.1} parent=63 // pred_fallthru
          _
      $region64: #{tpu_custom_call.1} parent=5 // pred_fallthru
        _
      %p1015 = scmp.le.s32.totalorder 2, %s26
      // Predicated region
      $region81: #{tpu_custom_call.1} parent=5 // pred_check
        %p1016 = pneg %p1015
      $region82: #{tpu_custom_call.1} parent=5 // pred_check_branch
        %1018 = sbr.rel (%p1016) target = $region84
      $region83: #{tpu_custom_call.1} parent=5 // pred_region
        %s1019 = ssub.s32 %s26, 2
        // Predicated region
        $region85: #{tpu_custom_call.1} parent=83 // pred_check
          %p1020 = pneg %p301
        $region86: #{tpu_custom_call.1} parent=83 // pred_check_branch
          %1022 = sbr.rel (%p1020) target = $region88
        $region87: #{tpu_custom_call.1} parent=83 // pred_region
          %s1023 = sand.u32 %s286, 1
          %s1024 = scalar_lea.sflag [#allocation4], %s1023
          %s1025 = sand.u32 %s286, 1
          %s1026 = smul.addr %s1025, 8
          %s1027 = scalar_lea.vmem [#allocation8], %s1026
          %1029 = dma.done %s1024, 128
        $region88: #{tpu_custom_call.1} parent=83 // pred_fallthru
          _
      $region84: #{tpu_custom_call.1} parent=5 // pred_fallthru
        _
    $region6: #{tpu_custom_call.1} parent=1 // loop_footer
      %s30 = sadd.s32 1, %s26
    $region7: #{tpu_custom_call.1} parent=1 // loop_footer_branch
      %25 = sbr.rel target = $region3
    $region8: #{tpu_custom_call.1} parent=1 // loop_exit
      _
    %1030 = vsyncpa [#allocation3], 1
    %s1031 = scalar_lea.sflag [#allocation3], 1
    %1032 = vsyncpa %s1031, 1
    %1033 = vsyncpa [#allocation6], 1
    %s1034 = scalar_lea.sflag [#allocation6], 1
    %1035 = vsyncpa %s1034, 1
    %1036 = vsyncpa [#allocation4], 1
    %s1037 = scalar_lea.sflag [#allocation4], 1
    %1038 = vsyncpa %s1037, 1

</llo_original>
